<compile_context>
chip_gen: v6e
topology: v6e:2x2x1
jax: 0.10.0
libtpu: 0.0.40
codegen_flags: <defaults>
</compile_context>

<pallas_src>
import jax
import jax.numpy as jnp
from jax.experimental import pallas as pl
from jax.experimental.pallas import tpu as pltpu


def _gru_stack_kernel(x_emb_ref, wih_ref, whh_ref, bih_ref, bhh_ref, h0_ref,
                      hout_ref):
    """Full L-layer GRU stack for one token, in a single grid step.

    x_emb_ref : (1, 1, H)    f32   embedded (dropout'd) token
    wih_ref   : (L, 3, H, H) bf16  per-layer, per-gate W_ih^T  (gate order r, z, n)
    whh_ref   : (L, 3, H, H) bf16  per-layer, per-gate W_hh^T
    bih_ref   : (L, 3, 1, H) f32   per-layer, per-gate b_ih
    bhh_ref   : (L, 3, 1, H) f32   per-layer, per-gate b_hh
    h0_ref    : (L, 1, H)    f32   previous hidden state
    hout_ref  : (L, 1, H)    f32   new hidden state (aliased onto h0 in HBM)
    """
    num_layers = h0_ref.shape[0]
    wdt = wih_ref.dtype

    x = x_emb_ref[0]                                   # (1, H) f32, layer-0 input

    # Static unrolled layer loop (L is small and compile-time constant).  For
    # deep stacks switch to lax.fori_loop(..., unroll=True) to bound live ranges.
    for l in range(num_layers):
        h = h0_ref[l]                                  # (1, H) f32
        xb = x.astype(wdt)
        hb = h.astype(wdt)

        # Per-gate, lane-aligned matmuls: (1,H) @ (H,H) -> (1,H), f32 accumulate.
        i_r = jnp.dot(xb, wih_ref[l, 0], preferred_element_type=jnp.float32) + bih_ref[l, 0]
        i_z = jnp.dot(xb, wih_ref[l, 1], preferred_element_type=jnp.float32) + bih_ref[l, 1]
        i_n = jnp.dot(xb, wih_ref[l, 2], preferred_element_type=jnp.float32) + bih_ref[l, 2]
        h_r = jnp.dot(hb, whh_ref[l, 0], preferred_element_type=jnp.float32) + bhh_ref[l, 0]
        h_z = jnp.dot(hb, whh_ref[l, 1], preferred_element_type=jnp.float32) + bhh_ref[l, 1]
        h_n = jnp.dot(hb, whh_ref[l, 2], preferred_element_type=jnp.float32) + bhh_ref[l, 2]

        r = jax.nn.sigmoid(i_r + h_r)
        z = jax.nn.sigmoid(i_z + h_z)
        n = jnp.tanh(i_n + r * h_n)
        h_new = (1.0 - z) * n + z * h                  # (1, H) f32

        hout_ref[l] = h_new.astype(hout_ref.dtype)     # VMEM write; one HBM writeback at end
        # TODO(synk): torch.nn.GRU inter-layer dropout (dropout_rnn) is train-only;
        # inference semantics are identity, so nothing is applied between layers.
        x = h_new                                      # feed the next layer


def prepare_params(params, weight_dtype=jnp.bfloat16):
    """One-time layout transform (call once, OUTSIDE the per-token decode loop).

    Splits the packed torch (3H, H) GRU matrices into per-gate (H, H) blocks,
    pre-transposes them so the kernel computes x @ W directly, and casts the
    large weight matrices to bf16 for halved HBM streaming (f32 accumulation
    happens inside the kernel).
    """
    L, threeH, H = params["weight_ih"].shape
    assert threeH == 3 * H

    def split_w(w):  # (L, 3H, H) -> (L, 3, H, H), [l, g] = W_g^T (gate order r, z, n)
        return jnp.transpose(w.reshape(L, 3, H, H), (0, 1, 3, 2)).astype(weight_dtype)

    def split_b(b):  # (L, 3H) -> (L, 3, 1, H), lane-aligned per gate
        return b.reshape(L, 3, 1, H).astype(jnp.float32)

    return {
        "embedding": params["embedding"].astype(jnp.float32),   # (V, H)
        "w_ih": split_w(params["weight_ih"]),
        "w_hh": split_w(params["weight_hh"]),
        "b_ih": split_b(params["bias_ih"]),
        "b_hh": split_b(params["bias_hh"]),
    }


def encoder_gru_forward(token, hidden, prep):
    """token: int32 scalar, hidden: (L,1,H) f32, prep: prepare_params() output.

    Returns (output (1,1,H), new_hidden (L,1,H)) matching EncoderGRU.forward.
    """
    emb = prep["embedding"]
    H = emb.shape[1]
    L = hidden.shape[0]

    # Glue ops outside the kernel: embedding row gather + view(1, 1, -1).
    # Dropout(dropout_embedded) is identity in eval mode.
    embedded = emb[token].reshape(1, 1, H).astype(jnp.float32)

    grid_spec = pltpu.PrefetchScalarGridSpec(
        num_scalar_prefetch=0,
        grid=(1,),                                   # single step: whole stack in one launch
        in_specs=[
            pl.BlockSpec((1, 1, H), lambda i: (0, 0, 0)),           # embedded token
            pl.BlockSpec((L, 3, H, H), lambda i: (0, 0, 0, 0)),     # W_ih^T per gate (bf16)
            pl.BlockSpec((L, 3, H, H), lambda i: (0, 0, 0, 0)),     # W_hh^T per gate (bf16)
            pl.BlockSpec((L, 3, 1, H), lambda i: (0, 0, 0, 0)),     # b_ih per gate
            pl.BlockSpec((L, 3, 1, H), lambda i: (0, 0, 0, 0)),     # b_hh per gate
            pl.BlockSpec((L, 1, H), lambda i: (0, 0, 0)),           # previous hidden
        ],
        out_specs=pl.BlockSpec((L, 1, H), lambda i: (0, 0, 0)),     # new hidden (all layers)
    )

    hidden_new = pl.pallas_call(
        _gru_stack_kernel,
        out_shape=jax.ShapeDtypeStruct((L, 1, H), jnp.float32),
        grid_spec=grid_spec,
        # In-place hidden-state update: hidden input (arg index 5) aliases output 0.
        input_output_aliases={5: 0},
        compiler_params=pltpu.CompilerParams(
            dimension_semantics=("arbitrary",)),
    )(embedded, prep["w_ih"], prep["w_hh"], prep["b_ih"], prep["b_hh"], hidden)

    # For seq_len=1, the GRU "output" is exactly the top layer's new hidden state.
    output = hidden_new[L - 1:L].reshape(1, 1, H)
    return output, hidden_new


def _reference_forward(token, hidden, params, weight_dtype=None):
    """Pure-JAX reference mirroring torch.nn.GRU (gate order r, z, n).

    If weight_dtype is given, emulate the kernel's bf16 weight/activation rounding
    so the comparison can be tight; otherwise full-f32 torch semantics.
    """
    H = params["embedding"].shape[1]
    L = hidden.shape[0]
    x = params["embedding"][token].reshape(1, H).astype(jnp.float32)
    new_h = []
    for l in range(L):
        h = hidden[l]                                              # (1, H)
        w_ih = params["weight_ih"][l]
        w_hh = params["weight_hh"][l]
        if weight_dtype is not None:
            xq = x.astype(weight_dtype).astype(jnp.float32)
            hq = h.astype(weight_dtype).astype(jnp.float32)
            w_ih = w_ih.astype(weight_dtype).astype(jnp.float32)
            w_hh = w_hh.astype(weight_dtype).astype(jnp.float32)
        else:
            xq, hq = x, h
        gi = xq @ w_ih.T + params["bias_ih"][l]
        gh = hq @ w_hh.T + params["bias_hh"][l]
        i_r, i_z, i_n = gi[:, :H], gi[:, H:2 * H], gi[:, 2 * H:]
        h_r, h_z, h_n = gh[:, :H], gh[:, H:2 * H], gh[:, 2 * H:]
        r = jax.nn.sigmoid(i_r + h_r)
        z = jax.nn.sigmoid(i_z + h_z)
        n = jnp.tanh(i_n + r * h_n)
        h_new = (1.0 - z) * n + z * h
        new_h.append(h_new)
        x = h_new
    return x.reshape(1, 1, H), jnp.stack(new_h, axis=0)


def make_params(key, input_size, hidden_size, num_layers):
    """Deterministic synthetic parameters matching nn.Embedding + nn.GRU shapes."""
    H, L = hidden_size, num_layers
    k = 1.0 / jnp.sqrt(jnp.float32(H))
    keys = jax.random.split(key, 5)
    return {
        "embedding": jax.random.normal(keys[0], (input_size, H), jnp.float32),
        "weight_ih": jax.random.uniform(keys[1], (L, 3 * H, H), jnp.float32, -k, k),
        "weight_hh": jax.random.uniform(keys[2], (L, 3 * H, H), jnp.float32, -k, k),
        "bias_ih":   jax.random.uniform(keys[3], (L, 3 * H), jnp.float32, -k, k),
        "bias_hh":   jax.random.uniform(keys[4], (L, 3 * H), jnp.float32, -k, k),
    }


if __name__ == "__main__":
    input_size = 20      # vocab size
    hidden_size = 32
    num_layers = 2

    key = jax.random.PRNGKey(0)
    params = make_params(key, input_size, hidden_size, num_layers)
    prep = prepare_params(params)        # one-time layout transform + bf16 weights

    token = jnp.int32(5)
    # Non-zero hidden (as produced mid-sequence) exercises the z*h recurrence path;
    # initHidden() zeros are a special case of this.
    hidden0 = jnp.tanh(jax.random.normal(jax.random.PRNGKey(1),
                                         (num_layers, 1, hidden_size), jnp.float32))

    # References computed up-front (before the aliased in-place kernel call).
    ref_out, ref_hidden = _reference_forward(token, hidden0, params)
    qref_out, qref_hidden = _reference_forward(token, hidden0, params,
                                               weight_dtype=jnp.bfloat16)

    output, hidden_out = encoder_gru_forward(token, hidden0, prep)
    jax.block_until_ready((output, hidden_out))

    assert output.shape == (1, 1, hidden_size)
    assert hidden_out.shape == (num_layers, 1, hidden_size)
    # Tight check vs a reference that applies the same bf16 weight rounding.
    assert jnp.allclose(output, qref_out, atol=1e-3, rtol=1e-3)
    assert jnp.allclose(hidden_out, qref_hidden, atol=1e-3, rtol=1e-3)
    # Loose check vs the exact f32 torch-semantics reference (bf16 quantization noise).
    assert jnp.allclose(output, ref_out, atol=5e-2, rtol=5e-2)
    assert jnp.allclose(hidden_out, ref_hidden, atol=5e-2, rtol=5e-2)

    print("KERNEL_OK")
</pallas_src>

<mosaic_0001>
module attributes {stable_mosaic.version = 11 : i64} {
  func.func @_gru_stack_kernel(%arg0: i32, %arg1: memref<1x1x32xf32, #tpu.memory_space<vmem>>, %arg2: memref<2x3x32x32xbf16, #tpu.memory_space<vmem>>, %arg3: memref<2x3x32x32xbf16, #tpu.memory_space<vmem>>, %arg4: memref<2x3x1x32xf32, #tpu.memory_space<vmem>>, %arg5: memref<2x3x1x32xf32, #tpu.memory_space<vmem>>, %arg6: memref<2x1x32xf32, #tpu.memory_space<vmem>>, %arg7: memref<2x1x32xf32, #tpu.memory_space<vmem>>) attributes {dimension_semantics = [#tpu.dimension_semantics<arbitrary>], iteration_bounds = array<i64: 1>, scalar_prefetch = 0 : i64, scratch_operands = 0 : i64, tpu.core_type = #tpu.core_type<tc>, window_params = [{pipeline_mode = #tpu.pipeline_mode<synchronous>, transform_indices = @transform_0, window_bounds = array<i64: 1, 1, 32>}, {pipeline_mode = #tpu.pipeline_mode<synchronous>, transform_indices = @transform_1, window_bounds = array<i64: 2, 3, 32, 32>}, {pipeline_mode = #tpu.pipeline_mode<synchronous>, transform_indices = @transform_2, window_bounds = array<i64: 2, 3, 32, 32>}, {pipeline_mode = #tpu.pipeline_mode<synchronous>, transform_indices = @transform_3, window_bounds = array<i64: 2, 3, 1, 32>}, {pipeline_mode = #tpu.pipeline_mode<synchronous>, transform_indices = @transform_4, window_bounds = array<i64: 2, 3, 1, 32>}, {pipeline_mode = #tpu.pipeline_mode<synchronous>, transform_indices = @transform_5, window_bounds = array<i64: 2, 1, 32>}, {pipeline_mode = #tpu.pipeline_mode<synchronous>, transform_indices = @transform_6, window_bounds = array<i64: 2, 1, 32>}]} {
    %c0 = arith.constant 0 : index
    %c0_0 = arith.constant 0 : index
    %c0_1 = arith.constant 0 : index
    %0 = vector.load %arg1[%c0, %c0_0, %c0_1] : memref<1x1x32xf32, #tpu.memory_space<vmem>>, vector<1x1x32xf32>
    %1 = vector.shape_cast %0 : vector<1x1x32xf32> to vector<1x32xf32>
    %c0_2 = arith.constant 0 : index
    %c0_3 = arith.constant 0 : index
    %c0_4 = arith.constant 0 : index
    %2 = vector.load %arg6[%c0_2, %c0_3, %c0_4] : memref<2x1x32xf32, #tpu.memory_space<vmem>>, vector<1x1x32xf32>
    %3 = vector.shape_cast %2 : vector<1x1x32xf32> to vector<1x32xf32>
    %4 = arith.truncf %1 : vector<1x32xf32> to vector<1x32xbf16>
    %5 = arith.truncf %3 : vector<1x32xf32> to vector<1x32xbf16>
    %c0_5 = arith.constant 0 : index
    %c0_6 = arith.constant 0 : index
    %c0_7 = arith.constant 0 : index
    %c0_8 = arith.constant 0 : index
    %6 = vector.load %arg2[%c0_5, %c0_6, %c0_7, %c0_8] : memref<2x3x32x32xbf16, #tpu.memory_space<vmem>>, vector<1x1x32x32xbf16>
    %7 = vector.shape_cast %6 : vector<1x1x32x32xbf16> to vector<32x32xbf16>
    %cst = arith.constant dense<0.000000e+00> : vector<1x32xf32>
    %8 = tpu.matmul %4, %7, %cst {dimension_numbers = #tpu.dot_dimension_numbers<[1], [0], [0], [1], [0, 0, 1, 1], [], []>} : vector<1x32xbf16>, vector<32x32xbf16>, vector<1x32xf32> -> vector<1x32xf32>
    %c0_9 = arith.constant 0 : index
    %c0_10 = arith.constant 0 : index
    %c0_11 = arith.constant 0 : index
    %c0_12 = arith.constant 0 : index
    %9 = vector.load %arg4[%c0_9, %c0_10, %c0_11, %c0_12] : memref<2x3x1x32xf32, #tpu.memory_space<vmem>>, vector<1x1x1x32xf32>
    %10 = vector.shape_cast %9 : vector<1x1x1x32xf32> to vector<1x32xf32>
    %11 = arith.addf %8, %10 : vector<1x32xf32>
    %c0_13 = arith.constant 0 : index
    %c1 = arith.constant 1 : index
    %c0_14 = arith.constant 0 : index
    %c0_15 = arith.constant 0 : index
    %12 = vector.load %arg2[%c0_13, %c1, %c0_14, %c0_15] : memref<2x3x32x32xbf16, #tpu.memory_space<vmem>>, vector<1x1x32x32xbf16>
    %13 = vector.shape_cast %12 : vector<1x1x32x32xbf16> to vector<32x32xbf16>
    %cst_16 = arith.constant dense<0.000000e+00> : vector<1x32xf32>
    %14 = tpu.matmul %4, %13, %cst_16 {dimension_numbers = #tpu.dot_dimension_numbers<[1], [0], [0], [1], [0, 0, 1, 1], [], []>} : vector<1x32xbf16>, vector<32x32xbf16>, vector<1x32xf32> -> vector<1x32xf32>
    %c0_17 = arith.constant 0 : index
    %c1_18 = arith.constant 1 : index
    %c0_19 = arith.constant 0 : index
    %c0_20 = arith.constant 0 : index
    %15 = vector.load %arg4[%c0_17, %c1_18, %c0_19, %c0_20] : memref<2x3x1x32xf32, #tpu.memory_space<vmem>>, vector<1x1x1x32xf32>
    %16 = vector.shape_cast %15 : vector<1x1x1x32xf32> to vector<1x32xf32>
    %17 = arith.addf %14, %16 : vector<1x32xf32>
    %c0_21 = arith.constant 0 : index
    %c2 = arith.constant 2 : index
    %c0_22 = arith.constant 0 : index
    %c0_23 = arith.constant 0 : index
    %18 = vector.load %arg2[%c0_21, %c2, %c0_22, %c0_23] : memref<2x3x32x32xbf16, #tpu.memory_space<vmem>>, vector<1x1x32x32xbf16>
    %19 = vector.shape_cast %18 : vector<1x1x32x32xbf16> to vector<32x32xbf16>
    %cst_24 = arith.constant dense<0.000000e+00> : vector<1x32xf32>
    %20 = tpu.matmul %4, %19, %cst_24 {dimension_numbers = #tpu.dot_dimension_numbers<[1], [0], [0], [1], [0, 0, 1, 1], [], []>} : vector<1x32xbf16>, vector<32x32xbf16>, vector<1x32xf32> -> vector<1x32xf32>
    %c0_25 = arith.constant 0 : index
    %c2_26 = arith.constant 2 : index
    %c0_27 = arith.constant 0 : index
    %c0_28 = arith.constant 0 : index
    %21 = vector.load %arg4[%c0_25, %c2_26, %c0_27, %c0_28] : memref<2x3x1x32xf32, #tpu.memory_space<vmem>>, vector<1x1x1x32xf32>
    %22 = vector.shape_cast %21 : vector<1x1x1x32xf32> to vector<1x32xf32>
    %23 = arith.addf %20, %22 : vector<1x32xf32>
    %c0_29 = arith.constant 0 : index
    %c0_30 = arith.constant 0 : index
    %c0_31 = arith.constant 0 : index
    %c0_32 = arith.constant 0 : index
    %24 = vector.load %arg3[%c0_29, %c0_30, %c0_31, %c0_32] : memref<2x3x32x32xbf16, #tpu.memory_space<vmem>>, vector<1x1x32x32xbf16>
    %25 = vector.shape_cast %24 : vector<1x1x32x32xbf16> to vector<32x32xbf16>
    %cst_33 = arith.constant dense<0.000000e+00> : vector<1x32xf32>
    %26 = tpu.matmul %5, %25, %cst_33 {dimension_numbers = #tpu.dot_dimension_numbers<[1], [0], [0], [1], [0, 0, 1, 1], [], []>} : vector<1x32xbf16>, vector<32x32xbf16>, vector<1x32xf32> -> vector<1x32xf32>
    %c0_34 = arith.constant 0 : index
    %c0_35 = arith.constant 0 : index
    %c0_36 = arith.constant 0 : index
    %c0_37 = arith.constant 0 : index
    %27 = vector.load %arg5[%c0_34, %c0_35, %c0_36, %c0_37] : memref<2x3x1x32xf32, #tpu.memory_space<vmem>>, vector<1x1x1x32xf32>
    %28 = vector.shape_cast %27 : vector<1x1x1x32xf32> to vector<1x32xf32>
    %29 = arith.addf %26, %28 : vector<1x32xf32>
    %c0_38 = arith.constant 0 : index
    %c1_39 = arith.constant 1 : index
    %c0_40 = arith.constant 0 : index
    %c0_41 = arith.constant 0 : index
    %30 = vector.load %arg3[%c0_38, %c1_39, %c0_40, %c0_41] : memref<2x3x32x32xbf16, #tpu.memory_space<vmem>>, vector<1x1x32x32xbf16>
    %31 = vector.shape_cast %30 : vector<1x1x32x32xbf16> to vector<32x32xbf16>
    %cst_42 = arith.constant dense<0.000000e+00> : vector<1x32xf32>
    %32 = tpu.matmul %5, %31, %cst_42 {dimension_numbers = #tpu.dot_dimension_numbers<[1], [0], [0], [1], [0, 0, 1, 1], [], []>} : vector<1x32xbf16>, vector<32x32xbf16>, vector<1x32xf32> -> vector<1x32xf32>
    %c0_43 = arith.constant 0 : index
    %c1_44 = arith.constant 1 : index
    %c0_45 = arith.constant 0 : index
    %c0_46 = arith.constant 0 : index
    %33 = vector.load %arg5[%c0_43, %c1_44, %c0_45, %c0_46] : memref<2x3x1x32xf32, #tpu.memory_space<vmem>>, vector<1x1x1x32xf32>
    %34 = vector.shape_cast %33 : vector<1x1x1x32xf32> to vector<1x32xf32>
    %35 = arith.addf %32, %34 : vector<1x32xf32>
    %c0_47 = arith.constant 0 : index
    %c2_48 = arith.constant 2 : index
    %c0_49 = arith.constant 0 : index
    %c0_50 = arith.constant 0 : index
    %36 = vector.load %arg3[%c0_47, %c2_48, %c0_49, %c0_50] : memref<2x3x32x32xbf16, #tpu.memory_space<vmem>>, vector<1x1x32x32xbf16>
    %37 = vector.shape_cast %36 : vector<1x1x32x32xbf16> to vector<32x32xbf16>
    %cst_51 = arith.constant dense<0.000000e+00> : vector<1x32xf32>
    %38 = tpu.matmul %5, %37, %cst_51 {dimension_numbers = #tpu.dot_dimension_numbers<[1], [0], [0], [1], [0, 0, 1, 1], [], []>} : vector<1x32xbf16>, vector<32x32xbf16>, vector<1x32xf32> -> vector<1x32xf32>
    %c0_52 = arith.constant 0 : index
    %c2_53 = arith.constant 2 : index
    %c0_54 = arith.constant 0 : index
    %c0_55 = arith.constant 0 : index
    %39 = vector.load %arg5[%c0_52, %c2_53, %c0_54, %c0_55] : memref<2x3x1x32xf32, #tpu.memory_space<vmem>>, vector<1x1x1x32xf32>
    %40 = vector.shape_cast %39 : vector<1x1x1x32xf32> to vector<1x32xf32>
    %41 = arith.addf %38, %40 : vector<1x32xf32>
    %42 = arith.addf %11, %29 : vector<1x32xf32>
    %43 = arith.negf %42 : vector<1x32xf32>
    %44 = math.exp %43 : vector<1x32xf32>
    %cst_56 = arith.constant 1.000000e+00 : f32
    %45 = vector.broadcast %cst_56 : f32 to vector<1x32xf32>
    %46 = arith.addf %45, %44 : vector<1x32xf32>
    %47 = arith.divf %45, %46 : vector<1x32xf32>
    %48 = arith.addf %17, %35 : vector<1x32xf32>
    %49 = arith.negf %48 : vector<1x32xf32>
    %50 = math.exp %49 : vector<1x32xf32>
    %cst_57 = arith.constant 1.000000e+00 : f32
    %51 = vector.broadcast %cst_57 : f32 to vector<1x32xf32>
    %52 = arith.addf %51, %50 : vector<1x32xf32>
    %53 = arith.divf %51, %52 : vector<1x32xf32>
    %54 = arith.mulf %47, %41 : vector<1x32xf32>
    %55 = arith.addf %23, %54 : vector<1x32xf32>
    %56 = math.tanh %55 : vector<1x32xf32>
    %cst_58 = arith.constant 1.000000e+00 : f32
    %57 = vector.broadcast %cst_58 : f32 to vector<1x32xf32>
    %58 = arith.subf %57, %53 : vector<1x32xf32>
    %59 = arith.mulf %58, %56 : vector<1x32xf32>
    %60 = arith.mulf %53, %3 : vector<1x32xf32>
    %61 = arith.addf %59, %60 : vector<1x32xf32>
    %c0_59 = arith.constant 0 : index
    %c0_60 = arith.constant 0 : index
    %c0_61 = arith.constant 0 : index
    %62 = vector.load %arg7[%c0_59, %c0_60, %c0_61] : memref<2x1x32xf32, #tpu.memory_space<vmem>>, vector<1x1x32xf32>
    %63 = vector.shape_cast %62 : vector<1x1x32xf32> to vector<1x32xf32>
    %64 = vector.shape_cast %61 : vector<1x32xf32> to vector<1x1x32xf32>
    tpu.vector_store %arg7[%c0_59, %c0_60, %c0_61], %64 {strides = array<i32>} : memref<2x1x32xf32, #tpu.memory_space<vmem>>, vector<1x1x32xf32>,
    %c1_62 = arith.constant 1 : index
    %c0_63 = arith.constant 0 : index
    %c0_64 = arith.constant 0 : index
    %65 = vector.load %arg6[%c1_62, %c0_63, %c0_64] : memref<2x1x32xf32, #tpu.memory_space<vmem>>, vector<1x1x32xf32>
    %66 = vector.shape_cast %65 : vector<1x1x32xf32> to vector<1x32xf32>
    %67 = arith.truncf %61 : vector<1x32xf32> to vector<1x32xbf16>
    %68 = arith.truncf %66 : vector<1x32xf32> to vector<1x32xbf16>
    %c1_65 = arith.constant 1 : index
    %c0_66 = arith.constant 0 : index
    %c0_67 = arith.constant 0 : index
    %c0_68 = arith.constant 0 : index
    %69 = vector.load %arg2[%c1_65, %c0_66, %c0_67, %c0_68] : memref<2x3x32x32xbf16, #tpu.memory_space<vmem>>, vector<1x1x32x32xbf16>
    %70 = vector.shape_cast %69 : vector<1x1x32x32xbf16> to vector<32x32xbf16>
    %cst_69 = arith.constant dense<0.000000e+00> : vector<1x32xf32>
    %71 = tpu.matmul %67, %70, %cst_69 {dimension_numbers = #tpu.dot_dimension_numbers<[1], [0], [0], [1], [0, 0, 1, 1], [], []>} : vector<1x32xbf16>, vector<32x32xbf16>, vector<1x32xf32> -> vector<1x32xf32>
    %c1_70 = arith.constant 1 : index
    %c0_71 = arith.constant 0 : index
    %c0_72 = arith.constant 0 : index
    %c0_73 = arith.constant 0 : index
    %72 = vector.load %arg4[%c1_70, %c0_71, %c0_72, %c0_73] : memref<2x3x1x32xf32, #tpu.memory_space<vmem>>, vector<1x1x1x32xf32>
    %73 = vector.shape_cast %72 : vector<1x1x1x32xf32> to vector<1x32xf32>
    %74 = arith.addf %71, %73 : vector<1x32xf32>
    %c1_74 = arith.constant 1 : index
    %c1_75 = arith.constant 1 : index
    %c0_76 = arith.constant 0 : index
    %c0_77 = arith.constant 0 : index
    %75 = vector.load %arg2[%c1_74, %c1_75, %c0_76, %c0_77] : memref<2x3x32x32xbf16, #tpu.memory_space<vmem>>, vector<1x1x32x32xbf16>
    %76 = vector.shape_cast %75 : vector<1x1x32x32xbf16> to vector<32x32xbf16>
    %cst_78 = arith.constant dense<0.000000e+00> : vector<1x32xf32>
    %77 = tpu.matmul %67, %76, %cst_78 {dimension_numbers = #tpu.dot_dimension_numbers<[1], [0], [0], [1], [0, 0, 1, 1], [], []>} : vector<1x32xbf16>, vector<32x32xbf16>, vector<1x32xf32> -> vector<1x32xf32>
    %c1_79 = arith.constant 1 : index
    %c1_80 = arith.constant 1 : index
    %c0_81 = arith.constant 0 : index
    %c0_82 = arith.constant 0 : index
    %78 = vector.load %arg4[%c1_79, %c1_80, %c0_81, %c0_82] : memref<2x3x1x32xf32, #tpu.memory_space<vmem>>, vector<1x1x1x32xf32>
    %79 = vector.shape_cast %78 : vector<1x1x1x32xf32> to vector<1x32xf32>
    %80 = arith.addf %77, %79 : vector<1x32xf32>
    %c1_83 = arith.constant 1 : index
    %c2_84 = arith.constant 2 : index
    %c0_85 = arith.constant 0 : index
    %c0_86 = arith.constant 0 : index
    %81 = vector.load %arg2[%c1_83, %c2_84, %c0_85, %c0_86] : memref<2x3x32x32xbf16, #tpu.memory_space<vmem>>, vector<1x1x32x32xbf16>
    %82 = vector.shape_cast %81 : vector<1x1x32x32xbf16> to vector<32x32xbf16>
    %cst_87 = arith.constant dense<0.000000e+00> : vector<1x32xf32>
    %83 = tpu.matmul %67, %82, %cst_87 {dimension_numbers = #tpu.dot_dimension_numbers<[1], [0], [0], [1], [0, 0, 1, 1], [], []>} : vector<1x32xbf16>, vector<32x32xbf16>, vector<1x32xf32> -> vector<1x32xf32>
    %c1_88 = arith.constant 1 : index
    %c2_89 = arith.constant 2 : index
    %c0_90 = arith.constant 0 : index
    %c0_91 = arith.constant 0 : index
    %84 = vector.load %arg4[%c1_88, %c2_89, %c0_90, %c0_91] : memref<2x3x1x32xf32, #tpu.memory_space<vmem>>, vector<1x1x1x32xf32>
    %85 = vector.shape_cast %84 : vector<1x1x1x32xf32> to vector<1x32xf32>
    %86 = arith.addf %83, %85 : vector<1x32xf32>
    %c1_92 = arith.constant 1 : index
    %c0_93 = arith.constant 0 : index
    %c0_94 = arith.constant 0 : index
    %c0_95 = arith.constant 0 : index
    %87 = vector.load %arg3[%c1_92, %c0_93, %c0_94, %c0_95] : memref<2x3x32x32xbf16, #tpu.memory_space<vmem>>, vector<1x1x32x32xbf16>
    %88 = vector.shape_cast %87 : vector<1x1x32x32xbf16> to vector<32x32xbf16>
    %cst_96 = arith.constant dense<0.000000e+00> : vector<1x32xf32>
    %89 = tpu.matmul %68, %88, %cst_96 {dimension_numbers = #tpu.dot_dimension_numbers<[1], [0], [0], [1], [0, 0, 1, 1], [], []>} : vector<1x32xbf16>, vector<32x32xbf16>, vector<1x32xf32> -> vector<1x32xf32>
    %c1_97 = arith.constant 1 : index
    %c0_98 = arith.constant 0 : index
    %c0_99 = arith.constant 0 : index
    %c0_100 = arith.constant 0 : index
    %90 = vector.load %arg5[%c1_97, %c0_98, %c0_99, %c0_100] : memref<2x3x1x32xf32, #tpu.memory_space<vmem>>, vector<1x1x1x32xf32>
    %91 = vector.shape_cast %90 : vector<1x1x1x32xf32> to vector<1x32xf32>
    %92 = arith.addf %89, %91 : vector<1x32xf32>
    %c1_101 = arith.constant 1 : index
    %c1_102 = arith.constant 1 : index
    %c0_103 = arith.constant 0 : index
    %c0_104 = arith.constant 0 : index
    %93 = vector.load %arg3[%c1_101, %c1_102, %c0_103, %c0_104] : memref<2x3x32x32xbf16, #tpu.memory_space<vmem>>, vector<1x1x32x32xbf16>
    %94 = vector.shape_cast %93 : vector<1x1x32x32xbf16> to vector<32x32xbf16>
    %cst_105 = arith.constant dense<0.000000e+00> : vector<1x32xf32>
    %95 = tpu.matmul %68, %94, %cst_105 {dimension_numbers = #tpu.dot_dimension_numbers<[1], [0], [0], [1], [0, 0, 1, 1], [], []>} : vector<1x32xbf16>, vector<32x32xbf16>, vector<1x32xf32> -> vector<1x32xf32>
    %c1_106 = arith.constant 1 : index
    %c1_107 = arith.constant 1 : index
    %c0_108 = arith.constant 0 : index
    %c0_109 = arith.constant 0 : index
    %96 = vector.load %arg5[%c1_106, %c1_107, %c0_108, %c0_109] : memref<2x3x1x32xf32, #tpu.memory_space<vmem>>, vector<1x1x1x32xf32>
    %97 = vector.shape_cast %96 : vector<1x1x1x32xf32> to vector<1x32xf32>
    %98 = arith.addf %95, %97 : vector<1x32xf32>
    %c1_110 = arith.constant 1 : index
    %c2_111 = arith.constant 2 : index
    %c0_112 = arith.constant 0 : index
    %c0_113 = arith.constant 0 : index
    %99 = vector.load %arg3[%c1_110, %c2_111, %c0_112, %c0_113] : memref<2x3x32x32xbf16, #tpu.memory_space<vmem>>, vector<1x1x32x32xbf16>
    %100 = vector.shape_cast %99 : vector<1x1x32x32xbf16> to vector<32x32xbf16>
    %cst_114 = arith.constant dense<0.000000e+00> : vector<1x32xf32>
    %101 = tpu.matmul %68, %100, %cst_114 {dimension_numbers = #tpu.dot_dimension_numbers<[1], [0], [0], [1], [0, 0, 1, 1], [], []>} : vector<1x32xbf16>, vector<32x32xbf16>, vector<1x32xf32> -> vector<1x32xf32>
    %c1_115 = arith.constant 1 : index
    %c2_116 = arith.constant 2 : index
    %c0_117 = arith.constant 0 : index
    %c0_118 = arith.constant 0 : index
    %102 = vector.load %arg5[%c1_115, %c2_116, %c0_117, %c0_118] : memref<2x3x1x32xf32, #tpu.memory_space<vmem>>, vector<1x1x1x32xf32>
    %103 = vector.shape_cast %102 : vector<1x1x1x32xf32> to vector<1x32xf32>
    %104 = arith.addf %101, %103 : vector<1x32xf32>
    %105 = arith.addf %74, %92 : vector<1x32xf32>
    %106 = arith.negf %105 : vector<1x32xf32>
    %107 = math.exp %106 : vector<1x32xf32>
    %cst_119 = arith.constant 1.000000e+00 : f32
    %108 = vector.broadcast %cst_119 : f32 to vector<1x32xf32>
    %109 = arith.addf %108, %107 : vector<1x32xf32>
    %110 = arith.divf %108, %109 : vector<1x32xf32>
    %111 = arith.addf %80, %98 : vector<1x32xf32>
    %112 = arith.negf %111 : vector<1x32xf32>
    %113 = math.exp %112 : vector<1x32xf32>
    %cst_120 = arith.constant 1.000000e+00 : f32
    %114 = vector.broadcast %cst_120 : f32 to vector<1x32xf32>
    %115 = arith.addf %114, %113 : vector<1x32xf32>
    %116 = arith.divf %114, %115 : vector<1x32xf32>
    %117 = arith.mulf %110, %104 : vector<1x32xf32>
    %118 = arith.addf %86, %117 : vector<1x32xf32>
    %119 = math.tanh %118 : vector<1x32xf32>
    %cst_121 = arith.constant 1.000000e+00 : f32
    %120 = vector.broadcast %cst_121 : f32 to vector<1x32xf32>
    %121 = arith.subf %120, %116 : vector<1x32xf32>
    %122 = arith.mulf %121, %119 : vector<1x32xf32>
    %123 = arith.mulf %116, %66 : vector<1x32xf32>
    %124 = arith.addf %122, %123 : vector<1x32xf32>
    %c1_122 = arith.constant 1 : index
    %c0_123 = arith.constant 0 : index
    %c0_124 = arith.constant 0 : index
    %125 = vector.load %arg7[%c1_122, %c0_123, %c0_124] : memref<2x1x32xf32, #tpu.memory_space<vmem>>, vector<1x1x32xf32>
    %126 = vector.shape_cast %125 : vector<1x1x32xf32> to vector<1x32xf32>
    %127 = vector.shape_cast %124 : vector<1x32xf32> to vector<1x1x32xf32>
    tpu.vector_store %arg7[%c1_122, %c0_123, %c0_124], %127 {strides = array<i32>} : memref<2x1x32xf32, #tpu.memory_space<vmem>>, vector<1x1x32xf32>,
    return
  }
  func.func @transform_0(%arg0: i32) -> (i32, i32, i32) {
    %c0_i32 = arith.constant 0 : i32
    %c0_i32_0 = arith.constant 0 : i32
    %c0_i32_1 = arith.constant 0 : i32
    %c0_i32_2 = arith.constant 0 : i32
    return %c0_i32, %c0_i32_0, %c0_i32_1 : i32, i32, i32
  }
  func.func @transform_1(%arg0: i32) -> (i32, i32, i32, i32) {
    %c0_i32 = arith.constant 0 : i32
    %c0_i32_0 = arith.constant 0 : i32
    %c0_i32_1 = arith.constant 0 : i32
    %c0_i32_2 = arith.constant 0 : i32
    %c0_i32_3 = arith.constant 0 : i32
    return %c0_i32, %c0_i32_0, %c0_i32_1, %c0_i32_2 : i32, i32, i32, i32
  }
  func.func @transform_2(%arg0: i32) -> (i32, i32, i32, i32) {
    %c0_i32 = arith.constant 0 : i32
    %c0_i32_0 = arith.constant 0 : i32
    %c0_i32_1 = arith.constant 0 : i32
    %c0_i32_2 = arith.constant 0 : i32
    %c0_i32_3 = arith.constant 0 : i32
    return %c0_i32, %c0_i32_0, %c0_i32_1, %c0_i32_2 : i32, i32, i32, i32
  }
  func.func @transform_3(%arg0: i32) -> (i32, i32, i32, i32) {
    %c0_i32 = arith.constant 0 : i32
    %c0_i32_0 = arith.constant 0 : i32
    %c0_i32_1 = arith.constant 0 : i32
    %c0_i32_2 = arith.constant 0 : i32
    %c0_i32_3 = arith.constant 0 : i32
    return %c0_i32, %c0_i32_0, %c0_i32_1, %c0_i32_2 : i32, i32, i32, i32
  }
  func.func @transform_4(%arg0: i32) -> (i32, i32, i32, i32) {
    %c0_i32 = arith.constant 0 : i32
    %c0_i32_0 = arith.constant 0 : i32
    %c0_i32_1 = arith.constant 0 : i32
    %c0_i32_2 = arith.constant 0 : i32
    %c0_i32_3 = arith.constant 0 : i32
    return %c0_i32, %c0_i32_0, %c0_i32_1, %c0_i32_2 : i32, i32, i32, i32
  }
  func.func @transform_5(%arg0: i32) -> (i32, i32, i32) {
    %c0_i32 = arith.constant 0 : i32
    %c0_i32_0 = arith.constant 0 : i32
    %c0_i32_1 = arith.constant 0 : i32
    %c0_i32_2 = arith.constant 0 : i32
    return %c0_i32, %c0_i32_0, %c0_i32_1 : i32, i32, i32
  }
  func.func @transform_6(%arg0: i32) -> (i32, i32, i32) {
    %c0_i32 = arith.constant 0 : i32
    %c0_i32_0 = arith.constant 0 : i32
    %c0_i32_1 = arith.constant 0 : i32
    %c0_i32_2 = arith.constant 0 : i32
    return %c0_i32, %c0_i32_0, %c0_i32_1 : i32, i32, i32
  }
}

</mosaic_0001>

<llo_original>
// kernel: tpu_custom_call.1
$region0: #{tpu_custom_call.1}
  #allocation0 [shape = 'u32[]', space=smem, size = 0x4, offset = 0x4, fixed_abs, tag = 'smem constant byte address 0x4 - core index']
  #allocation1 [shape = 'u32[144,128]{1,0:T(1,128)}', space=vmem, size = 0x12000, scoped, tag = 'internal scratch']
  %s0 = inlined_call_operand.vmem [shape: f32[1,1,32], index: 0, kind: input, shape index: {}]
  %s1 = inlined_call_operand.hbm [shape: bf16[2,3,32,32], index: 1, kind: input, shape index: {}]
  %s2 = inlined_call_operand.hbm [shape: bf16[2,3,32,32], index: 2, kind: input, shape index: {}]
  %s3 = inlined_call_operand.vmem [shape: f32[2,3,1,32], index: 3, kind: input, shape index: {}]
  %s4 = inlined_call_operand.hbm [shape: f32[2,3,1,32], index: 4, kind: input, shape index: {}]
  %s5 = inlined_call_operand.hbm [shape: f32[2,1,32], index: 5, kind: input, shape index: {}, may-alias: {5,6}]
  %s6 = inlined_call_operand.hbm [shape: f32[2,1,32], index: 6, kind: output, shape index: {}, may-alias: {5,6}]
  %s7 = sld [smem:[#allocation0]]
  $region50: #{tpu_custom_call.1} parent=0
    _
  %s9 = ssub.s32 1, %s7
  %s10 = scalar_select 0, %s9, %s7
  $region1: #{tpu_custom_call.1} parent=0
    #allocation2 [shape = 'u8[49152]{0}', space=vmem, size = 0xc000, scoped, tag = 'input window, operand 1, single buffered']
    #allocation3 [shape = 's32[1]{0}', space=sflag, size = 0x4, scoped, tag = 'scoped memory for tpu_custom_call.1']
    #allocation4 [shape = 's32[1]{0}', space=sflag, size = 0x4, scoped, tag = 'scoped memory for tpu_custom_call.1']
    #allocation5 [shape = 'u8[49152]{0}', space=vmem, size = 0xc000, scoped, tag = 'input window, operand 2, single buffered']
    #allocation6 [shape = 's32[1]{0}', space=sflag, size = 0x4, scoped, tag = 'scoped memory for tpu_custom_call.1']
    #allocation7 [shape = 'u8[3072]{0}', space=vmem, size = 0xc00, scoped, tag = 'input window, operand 4, single buffered']
    #allocation8 [shape = 'u8[1024]{0}', space=vmem, size = 0x400, scoped, tag = 'input window, operand 5, single buffered']
    #allocation9 [shape = 's32[1]{0}', space=sflag, size = 0x4, scoped, tag = 'scoped memory for tpu_custom_call.1']
    #allocation10 [shape = 'u8[1024]{0}', space=vmem, size = 0x400, scoped, tag = 'output window, operand 0, single buffered']
    %11 = vsyncpa [#allocation3], 0
    %12 = vsyncpa [#allocation6], 0
    %13 = vsyncpa [#allocation9], 0
    %14 = vsyncpa [#allocation4], 0
    // Predicated region
    $region2: #{tpu_custom_call.1} parent=1 // pred_check
      _
    $region3: #{tpu_custom_call.1} parent=1 // pred_check_branch
      %16 = sbr.rel (0) target = $region5
    $region4: #{tpu_custom_call.1} parent=1 // pred_region
      _
    $region5: #{tpu_custom_call.1} parent=1 // pred_fallthru
      _
    // Predicated region
    $region6: #{tpu_custom_call.1} parent=1 // pred_check
      _
    $region7: #{tpu_custom_call.1} parent=1 // pred_check_branch
      %18 = sbr.rel (0) target = $region9
    $region8: #{tpu_custom_call.1} parent=1 // pred_region
      %s20 = ssub.s32 1536, 1536
      %21 = vsyncadd [#allocation3], %s20
      %s22 = sshll.u32 [#allocation2], 4
      %s23 = int_to_ptr.vmem [resolvable:$true] %s22
      %28 = dma.hbm_to_vmem [thread:$0]  %s1, 1536, %s23, [#allocation3], 64, 64, 4
    $region9: #{tpu_custom_call.1} parent=1 // pred_fallthru
      _
    // Predicated region
    $region10: #{tpu_custom_call.1} parent=1 // pred_check
      _
    $region11: #{tpu_custom_call.1} parent=1 // pred_check_branch
      %30 = sbr.rel (0) target = $region13
    $region12: #{tpu_custom_call.1} parent=1 // pred_region
      %s32 = ssub.s32 1536, 1536
      %33 = vsyncadd [#allocation6], %s32
      %s34 = sshll.u32 [#allocation5], 4
      %s35 = int_to_ptr.vmem [resolvable:$true] %s34
      %40 = dma.hbm_to_vmem [thread:$0]  %s2, 1536, %s35, [#allocation6], 64, 64, 4
    $region13: #{tpu_custom_call.1} parent=1 // pred_fallthru
      _
    // Predicated region
    $region14: #{tpu_custom_call.1} parent=1 // pred_check
      _
    $region15: #{tpu_custom_call.1} parent=1 // pred_check_branch
      %42 = sbr.rel (0) target = $region17
    $region16: #{tpu_custom_call.1} parent=1 // pred_region
      _
    $region17: #{tpu_custom_call.1} parent=1 // pred_fallthru
      _
    // Predicated region
    $region18: #{tpu_custom_call.1} parent=1 // pred_check
      _
    $region19: #{tpu_custom_call.1} parent=1 // pred_check_branch
      %44 = sbr.rel (0) target = $region21
    $region20: #{tpu_custom_call.1} parent=1 // pred_region
      %s46 = ssub.s32 96, 96
      %47 = vsyncadd [#allocation6], %s46
      %s48 = sshll.u32 [#allocation7], 4
      %s49 = int_to_ptr.vmem [resolvable:$true] %s48
      %54 = dma.hbm_to_vmem [thread:$0]  %s4, 96, %s49, [#allocation6], 16, 16, 1
    $region21: #{tpu_custom_call.1} parent=1 // pred_fallthru
      _
    // Predicated region
    $region22: #{tpu_custom_call.1} parent=1 // pred_check
      _
    $region23: #{tpu_custom_call.1} parent=1 // pred_check_branch
      %56 = sbr.rel (0) target = $region25
    $region24: #{tpu_custom_call.1} parent=1 // pred_region
      %s58 = ssub.s32 32, 32
      %59 = vsyncadd [#allocation9], %s58
      %s60 = sshll.u32 [#allocation8], 4
      %s61 = int_to_ptr.vmem [resolvable:$true] %s60
      %66 = dma.hbm_to_vmem [thread:$0]  %s5, 32, %s61, [#allocation9], 16, 16, 1
    $region25: #{tpu_custom_call.1} parent=1 // pred_fallthru
      _
    // Predicated region
    $region26: #{tpu_custom_call.1} parent=1 // pred_check
      _
    $region27: #{tpu_custom_call.1} parent=1 // pred_check_branch
      %68 = sbr.rel (0) target = $region29
    $region28: #{tpu_custom_call.1} parent=1 // pred_region
      %69 = dma.done [#allocation3], 1536
    $region29: #{tpu_custom_call.1} parent=1 // pred_fallthru
      _
    // Predicated region
    $region30: #{tpu_custom_call.1} parent=1 // pred_check
      _
    $region31: #{tpu_custom_call.1} parent=1 // pred_check_branch
      %71 = sbr.rel (0) target = $region33
    $region32: #{tpu_custom_call.1} parent=1 // pred_region
      %72 = dma.done [#allocation6], 1536
    $region33: #{tpu_custom_call.1} parent=1 // pred_fallthru
      _
    // Predicated region
    $region34: #{tpu_custom_call.1} parent=1 // pred_check
      _
    $region35: #{tpu_custom_call.1} parent=1 // pred_check_branch
      %74 = sbr.rel (0) target = $region37
    $region36: #{tpu_custom_call.1} parent=1 // pred_region
      %75 = dma.done [#allocation6], 96
    $region37: #{tpu_custom_call.1} parent=1 // pred_fallthru
      _
    // Predicated region
    $region38: #{tpu_custom_call.1} parent=1 // pred_check
      _
    $region39: #{tpu_custom_call.1} parent=1 // pred_check_branch
      %77 = sbr.rel (0) target = $region41
    $region40: #{tpu_custom_call.1} parent=1 // pred_region
      %78 = dma.done [#allocation9], 32
    $region41: #{tpu_custom_call.1} parent=1 // pred_fallthru
      _
    %v80 = vld [vmem:[%s0] sm:$0x1]
    %v81 = vld [vmem:[#allocation8] sm:$0x1]
    %v82 = vpack.c.bf16 %v80, %v80
    %v83 = vpack.c.bf16 %v81, %v81
    %v84 = vld [vmem:[#allocation2] sm:$0xf]
    %v85 = vld [vmem:[#allocation2 + $0x4] sm:$0xf]
    %v86 = vld [vmem:[#allocation2 + $0x8] sm:$0xf]
    %v87 = vld [vmem:[#allocation2 + $0xc] sm:$0xf]
    %v88 = vld [vmem:[%s3] sm:$0x1]
    %v93 = vunpack.c.l.b16 %v84
    %v94 = vunpack.c.l.b16 %v85
    %v95 = vunpack.c.l.b16 %v86
    %v96 = vunpack.c.l.b16 %v87
    %v97 = vpack.c.b16 %v94, %v93
    %v98 = vpack.c.b16 %v96, %v95
    %vm101 = vcmask 261120
    %v103 = vsel %vm101, %v82, 0
    %105 = vmatprep.subr.bf16.mxu0 0
    %106 = vmatpush1.bf16.msra.mxu0 0
    %107 = vmatprep.subr.bf16.mxu0 0
    %108 = vmatpush1.bf16.msra.mxu0 0
    %109 = vmatprep.subr.bf16.mxu0 0
    %110 = vmatpush1.bf16.msra.mxu0 0
    %111 = vmatprep.subr.bf16.mxu0 0
    %112 = vmatpush1.bf16.msra.mxu0 0
    %113 = vmatprep.subr.bf16.mxu0 0
    %114 = vmatpush1.bf16.msra.mxu0 0
    %115 = vmatprep.subr.bf16.mxu0 0
    %116 = vmatpush1.bf16.msra.mxu0 0
    %117 = vmatprep.subr.bf16.mxu0 0
    %118 = vmatpush1.bf16.msra.mxu0 %v98
    %119 = vmatprep.subr.bf16.mxu0 0
    %120 = vmatpush1.bf16.msra.mxu0 %v97
    %121 = vmatprep.subr.bf16.mxu0 0
    %122 = vmatpush2.bf16.msra.mxu0 0
    %123 = vmatprep.subr.bf16.mxu0 0
    %124 = vmatpush2.bf16.msra.mxu0 0
    %125 = vmatprep.subr.bf16.mxu0 0
    %126 = vmatpush2.bf16.msra.mxu0 0
    %127 = vmatprep.subr.bf16.mxu0 0
    %128 = vmatpush2.bf16.msra.mxu0 0
    %129 = vmatprep.subr.bf16.mxu0 0
    %130 = vmatpush2.bf16.msra.mxu0 0
    %131 = vmatprep.subr.bf16.mxu0 0
    %132 = vmatpush2.bf16.msra.mxu0 0
    %133 = vmatprep.subr.bf16.mxu0 0
    %134 = vmatpush2.bf16.msra.mxu0 0
    %135 = vmatprep.subr.bf16.mxu0 0
    %136 = vmatpush2.bf16.msra.mxu0 0
    %137 = vmatprep.mubr.bf16.mxu0 0
    %138 = vmatmul.mubr.bf16.gmra.mxu0 %v103
    %v139 = vpop.f32.mrf.mxu0
    %v140 = vadd.f32 %v88, %v139
    %v141 = vpop.f32.mrf.mxu0
    %v142 = vpop.f32.mrf.mxu0
    %v143 = vpop.f32.mrf.mxu0
    %144 = vdwg.mxu0
    %s145 = scalar_lea.vmem [#allocation2], 16
    %v146 = vld [vmem:[%s145] sm:$0xf]
    %v147 = vld [vmem:[%s145 + $0x4] sm:$0xf]
    %v148 = vld [vmem:[%s145 + $0x8] sm:$0xf]
    %v149 = vld [vmem:[%s145 + $0xc] sm:$0xf]
    %s150 = scalar_lea.vmem %s3, 1
    %v151 = vld [vmem:[%s150] sm:$0x1]
    %v156 = vunpack.c.l.b16 %v146
    %v157 = vunpack.c.l.b16 %v147
    %v158 = vunpack.c.l.b16 %v148
    %v159 = vunpack.c.l.b16 %v149
    %v160 = vpack.c.b16 %v157, %v156
    %v161 = vpack.c.b16 %v159, %v158
    %164 = vmatprep.subr.bf16.mxu0 0
    %165 = vmatpush1.bf16.msra.mxu0 0
    %166 = vmatprep.subr.bf16.mxu0 0
    %167 = vmatpush1.bf16.msra.mxu0 0
    %168 = vmatprep.subr.bf16.mxu0 0
    %169 = vmatpush1.bf16.msra.mxu0 0
    %170 = vmatprep.subr.bf16.mxu0 0
    %171 = vmatpush1.bf16.msra.mxu0 0
    %172 = vmatprep.subr.bf16.mxu0 0
    %173 = vmatpush1.bf16.msra.mxu0 0
    %174 = vmatprep.subr.bf16.mxu0 0
    %175 = vmatpush1.bf16.msra.mxu0 0
    %176 = vmatprep.subr.bf16.mxu0 0
    %177 = vmatpush1.bf16.msra.mxu0 %v161
    %178 = vmatprep.subr.bf16.mxu0 0
    %179 = vmatpush1.bf16.msra.mxu0 %v160
    %180 = vmatprep.subr.bf16.mxu0 0
    %181 = vmatpush2.bf16.msra.mxu0 0
    %182 = vmatprep.subr.bf16.mxu0 0
    %183 = vmatpush2.bf16.msra.mxu0 0
    %184 = vmatprep.subr.bf16.mxu0 0
    %185 = vmatpush2.bf16.msra.mxu0 0
    %186 = vmatprep.subr.bf16.mxu0 0
    %187 = vmatpush2.bf16.msra.mxu0 0
    %188 = vmatprep.subr.bf16.mxu0 0
    %189 = vmatpush2.bf16.msra.mxu0 0
    %190 = vmatprep.subr.bf16.mxu0 0
    %191 = vmatpush2.bf16.msra.mxu0 0
    %192 = vmatprep.subr.bf16.mxu0 0
    %193 = vmatpush2.bf16.msra.mxu0 0
    %194 = vmatprep.subr.bf16.mxu0 0
    %195 = vmatpush2.bf16.msra.mxu0 0
    %196 = vmatprep.mubr.bf16.mxu0 0
    %197 = vmatmul.mubr.bf16.gmra.mxu0 %v103
    %v198 = vpop.f32.mrf.mxu0
    %v199 = vadd.f32 %v151, %v198
    %v200 = vpop.f32.mrf.mxu0
    %v201 = vpop.f32.mrf.mxu0
    %v202 = vpop.f32.mrf.mxu0
    %203 = vdwg.mxu0
    %s204 = scalar_lea.vmem [#allocation2], 32
    %v205 = vld [vmem:[%s204] sm:$0xf]
    %v206 = vld [vmem:[%s204 + $0x4] sm:$0xf]
    %v207 = vld [vmem:[%s204 + $0x8] sm:$0xf]
    %v208 = vld [vmem:[%s204 + $0xc] sm:$0xf]
    %s209 = scalar_lea.vmem %s3, 2
    %v210 = vld [vmem:[%s209] sm:$0x1]
    %v215 = vunpack.c.l.b16 %v205
    %v216 = vunpack.c.l.b16 %v206
    %v217 = vunpack.c.l.b16 %v207
    %v218 = vunpack.c.l.b16 %v208
    %v219 = vpack.c.b16 %v216, %v215
    %v220 = vpack.c.b16 %v218, %v217
    %223 = vmatprep.subr.bf16.mxu0 0
    %224 = vmatpush1.bf16.msra.mxu0 0
    %225 = vmatprep.subr.bf16.mxu0 0
    %226 = vmatpush1.bf16.msra.mxu0 0
    %227 = vmatprep.subr.bf16.mxu0 0
    %228 = vmatpush1.bf16.msra.mxu0 0
    %229 = vmatprep.subr.bf16.mxu0 0
    %230 = vmatpush1.bf16.msra.mxu0 0
    %231 = vmatprep.subr.bf16.mxu0 0
    %232 = vmatpush1.bf16.msra.mxu0 0
    %233 = vmatprep.subr.bf16.mxu0 0
    %234 = vmatpush1.bf16.msra.mxu0 0
    %235 = vmatprep.subr.bf16.mxu0 0
    %236 = vmatpush1.bf16.msra.mxu0 %v220
    %237 = vmatprep.subr.bf16.mxu0 0
    %238 = vmatpush1.bf16.msra.mxu0 %v219
    %239 = vmatprep.subr.bf16.mxu0 0
    %240 = vmatpush2.bf16.msra.mxu0 0
    %241 = vmatprep.subr.bf16.mxu0 0
    %242 = vmatpush2.bf16.msra.mxu0 0
    %243 = vmatprep.subr.bf16.mxu0 0
    %244 = vmatpush2.bf16.msra.mxu0 0
    %245 = vmatprep.subr.bf16.mxu0 0
    %246 = vmatpush2.bf16.msra.mxu0 0
    %247 = vmatprep.subr.bf16.mxu0 0
    %248 = vmatpush2.bf16.msra.mxu0 0
    %249 = vmatprep.subr.bf16.mxu0 0
    %250 = vmatpush2.bf16.msra.mxu0 0
    %251 = vmatprep.subr.bf16.mxu0 0
    %252 = vmatpush2.bf16.msra.mxu0 0
    %253 = vmatprep.subr.bf16.mxu0 0
    %254 = vmatpush2.bf16.msra.mxu0 0
    %255 = vmatprep.mubr.bf16.mxu0 0
    %256 = vmatmul.mubr.bf16.gmra.mxu0 %v103
    %v257 = vpop.f32.mrf.mxu0
    %v258 = vadd.f32 %v210, %v257
    %v259 = vpop.f32.mrf.mxu0
    %v260 = vpop.f32.mrf.mxu0
    %v261 = vpop.f32.mrf.mxu0
    %262 = vdwg.mxu0
    %v263 = vld [vmem:[#allocation5] sm:$0xf]
    %v264 = vld [vmem:[#allocation5 + $0x4] sm:$0xf]
    %v265 = vld [vmem:[#allocation5 + $0x8] sm:$0xf]
    %v266 = vld [vmem:[#allocation5 + $0xc] sm:$0xf]
    %v267 = vld [vmem:[#allocation7] sm:$0x1]
    %v272 = vunpack.c.l.b16 %v263
    %v273 = vunpack.c.l.b16 %v264
    %v274 = vunpack.c.l.b16 %v265
    %v275 = vunpack.c.l.b16 %v266
    %v276 = vpack.c.b16 %v273, %v272
    %v277 = vpack.c.b16 %v275, %v274
    %v281 = vsel %vm101, %v83, 0
    %283 = vmatprep.subr.bf16.mxu0 0
    %284 = vmatpush1.bf16.msra.mxu0 0
    %285 = vmatprep.subr.bf16.mxu0 0
    %286 = vmatpush1.bf16.msra.mxu0 0
    %287 = vmatprep.subr.bf16.mxu0 0
    %288 = vmatpush1.bf16.msra.mxu0 0
    %289 = vmatprep.subr.bf16.mxu0 0
    %290 = vmatpush1.bf16.msra.mxu0 0
    %291 = vmatprep.subr.bf16.mxu0 0
    %292 = vmatpush1.bf16.msra.mxu0 0
    %293 = vmatprep.subr.bf16.mxu0 0
    %294 = vmatpush1.bf16.msra.mxu0 0
    %295 = vmatprep.subr.bf16.mxu0 0
    %296 = vmatpush1.bf16.msra.mxu0 %v277
    %297 = vmatprep.subr.bf16.mxu0 0
    %298 = vmatpush1.bf16.msra.mxu0 %v276
    %299 = vmatprep.subr.bf16.mxu0 0
    %300 = vmatpush2.bf16.msra.mxu0 0
    %301 = vmatprep.subr.bf16.mxu0 0
    %302 = vmatpush2.bf16.msra.mxu0 0
    %303 = vmatprep.subr.bf16.mxu0 0
    %304 = vmatpush2.bf16.msra.mxu0 0
    %305 = vmatprep.subr.bf16.mxu0 0
    %306 = vmatpush2.bf16.msra.mxu0 0
    %307 = vmatprep.subr.bf16.mxu0 0
    %308 = vmatpush2.bf16.msra.mxu0 0
    %309 = vmatprep.subr.bf16.mxu0 0
    %310 = vmatpush2.bf16.msra.mxu0 0
    %311 = vmatprep.subr.bf16.mxu0 0
    %312 = vmatpush2.bf16.msra.mxu0 0
    %313 = vmatprep.subr.bf16.mxu0 0
    %314 = vmatpush2.bf16.msra.mxu0 0
    %315 = vmatprep.mubr.bf16.mxu0 0
    %316 = vmatmul.mubr.bf16.gmra.mxu0 %v281
    %v317 = vpop.f32.mrf.mxu0
    %v318 = vadd.f32 %v267, %v317
    %v319 = vpop.f32.mrf.mxu0
    %v320 = vpop.f32.mrf.mxu0
    %v321 = vpop.f32.mrf.mxu0
    %322 = vdwg.mxu0
    %s323 = scalar_lea.vmem [#allocation5], 16
    %v324 = vld [vmem:[%s323] sm:$0xf]
    %v325 = vld [vmem:[%s323 + $0x4] sm:$0xf]
    %v326 = vld [vmem:[%s323 + $0x8] sm:$0xf]
    %v327 = vld [vmem:[%s323 + $0xc] sm:$0xf]
    %s328 = scalar_lea.vmem [#allocation7], 1
    %v329 = vld [vmem:[%s328] sm:$0x1]
    %v334 = vunpack.c.l.b16 %v324
    %v335 = vunpack.c.l.b16 %v325
    %v336 = vunpack.c.l.b16 %v326
    %v337 = vunpack.c.l.b16 %v327
    %v338 = vpack.c.b16 %v335, %v334
    %v339 = vpack.c.b16 %v337, %v336
    %342 = vmatprep.subr.bf16.mxu0 0
    %343 = vmatpush1.bf16.msra.mxu0 0
    %344 = vmatprep.subr.bf16.mxu0 0
    %345 = vmatpush1.bf16.msra.mxu0 0
    %346 = vmatprep.subr.bf16.mxu0 0
    %347 = vmatpush1.bf16.msra.mxu0 0
    %348 = vmatprep.subr.bf16.mxu0 0
    %349 = vmatpush1.bf16.msra.mxu0 0
    %350 = vmatprep.subr.bf16.mxu0 0
    %351 = vmatpush1.bf16.msra.mxu0 0
    %352 = vmatprep.subr.bf16.mxu0 0
    %353 = vmatpush1.bf16.msra.mxu0 0
    %354 = vmatprep.subr.bf16.mxu0 0
    %355 = vmatpush1.bf16.msra.mxu0 %v339
    %356 = vmatprep.subr.bf16.mxu0 0
    %357 = vmatpush1.bf16.msra.mxu0 %v338
    %358 = vmatprep.subr.bf16.mxu0 0
    %359 = vmatpush2.bf16.msra.mxu0 0
    %360 = vmatprep.subr.bf16.mxu0 0
    %361 = vmatpush2.bf16.msra.mxu0 0
    %362 = vmatprep.subr.bf16.mxu0 0
    %363 = vmatpush2.bf16.msra.mxu0 0
    %364 = vmatprep.subr.bf16.mxu0 0
    %365 = vmatpush2.bf16.msra.mxu0 0
    %366 = vmatprep.subr.bf16.mxu0 0
    %367 = vmatpush2.bf16.msra.mxu0 0
    %368 = vmatprep.subr.bf16.mxu0 0
    %369 = vmatpush2.bf16.msra.mxu0 0
    %370 = vmatprep.subr.bf16.mxu0 0
    %371 = vmatpush2.bf16.msra.mxu0 0
    %372 = vmatprep.subr.bf16.mxu0 0
    %373 = vmatpush2.bf16.msra.mxu0 0
    %374 = vmatprep.mubr.bf16.mxu0 0
    %375 = vmatmul.mubr.bf16.gmra.mxu0 %v281
    %v376 = vpop.f32.mrf.mxu0
    %v377 = vadd.f32 %v329, %v376
    %v378 = vpop.f32.mrf.mxu0
    %v379 = vpop.f32.mrf.mxu0
    %v380 = vpop.f32.mrf.mxu0
    %381 = vdwg.mxu0
    %s382 = scalar_lea.vmem [#allocation5], 32
    %v383 = vld [vmem:[%s382] sm:$0xf]
    %v384 = vld [vmem:[%s382 + $0x4] sm:$0xf]
    %v385 = vld [vmem:[%s382 + $0x8] sm:$0xf]
    %v386 = vld [vmem:[%s382 + $0xc] sm:$0xf]
    %s387 = scalar_lea.vmem [#allocation7], 2
    %v388 = vld [vmem:[%s387] sm:$0x1]
    %v393 = vunpack.c.l.b16 %v383
    %v394 = vunpack.c.l.b16 %v384
    %v395 = vunpack.c.l.b16 %v385
    %v396 = vunpack.c.l.b16 %v386
    %v397 = vpack.c.b16 %v394, %v393
    %v398 = vpack.c.b16 %v396, %v395
    %401 = vmatprep.subr.bf16.mxu0 0
    %402 = vmatpush1.bf16.msra.mxu0 0
    %403 = vmatprep.subr.bf16.mxu0 0
    %404 = vmatpush1.bf16.msra.mxu0 0
    %405 = vmatprep.subr.bf16.mxu0 0
    %406 = vmatpush1.bf16.msra.mxu0 0
    %407 = vmatprep.subr.bf16.mxu0 0
    %408 = vmatpush1.bf16.msra.mxu0 0
    %409 = vmatprep.subr.bf16.mxu0 0
    %410 = vmatpush1.bf16.msra.mxu0 0
    %411 = vmatprep.subr.bf16.mxu0 0
    %412 = vmatpush1.bf16.msra.mxu0 0
    %413 = vmatprep.subr.bf16.mxu0 0
    %414 = vmatpush1.bf16.msra.mxu0 %v398
    %415 = vmatprep.subr.bf16.mxu0 0
    %416 = vmatpush1.bf16.msra.mxu0 %v397
    %417 = vmatprep.subr.bf16.mxu0 0
    %418 = vmatpush2.bf16.msra.mxu0 0
    %419 = vmatprep.subr.bf16.mxu0 0
    %420 = vmatpush2.bf16.msra.mxu0 0
    %421 = vmatprep.subr.bf16.mxu0 0
    %422 = vmatpush2.bf16.msra.mxu0 0
    %423 = vmatprep.subr.bf16.mxu0 0
    %424 = vmatpush2.bf16.msra.mxu0 0
    %425 = vmatprep.subr.bf16.mxu0 0
    %426 = vmatpush2.bf16.msra.mxu0 0
    %427 = vmatprep.subr.bf16.mxu0 0
    %428 = vmatpush2.bf16.msra.mxu0 0
    %429 = vmatprep.subr.bf16.mxu0 0
    %430 = vmatpush2.bf16.msra.mxu0 0
    %431 = vmatprep.subr.bf16.mxu0 0
    %432 = vmatpush2.bf16.msra.mxu0 0
    %433 = vmatprep.mubr.bf16.mxu0 0
    %434 = vmatmul.mubr.bf16.gmra.mxu0 %v281
    %v435 = vpop.f32.mrf.mxu0
    %v436 = vadd.f32 %v388, %v435
    %v437 = vpop.f32.mrf.mxu0
    %v438 = vpop.f32.mrf.mxu0
    %v439 = vpop.f32.mrf.mxu0
    %440 = vdwg.mxu0
    %v441 = vadd.f32 %v140, %v318
    %v442 = vxor.u32 %v441, 2147483648
    %v443 = vmul.f32 %v442, 1.442695
    %v444 = vpow.pop %v443
    %v445 = vadd.f32 %v444, 1.0
    %v446 = vrcp.pop %v445
    %v447 = vmul.f32 1.0, %v446
    %v448 = vadd.f32 %v199, %v377
    %v449 = vxor.u32 %v448, 2147483648
    %v450 = vmul.f32 %v449, 1.442695
    %v451 = vpow.pop %v450
    %v452 = vadd.f32 %v451, 1.0
    %v453 = vrcp.pop %v452
    %v454 = vmul.f32 1.0, %v453
    %v455 = vmul.f32 %v447, %v436
    %v456 = vadd.f32 %v258, %v455
    %v457 = vtanh.pop %v456
    %v458 = vsub.f32 1.0, %v454
    %v459 = vmul.f32 %v458, %v457
    %v460 = vmul.f32 %v454, %v81
    %v461 = vadd.f32 %v459, %v460
    %vm462 = vcmask 253952
    %463 = vst.msk [vmem:[#allocation10] sm:$0x1] %vm462, %v461
    %s464 = scalar_lea.vmem [#allocation8], 1
    %v465 = vld [vmem:[%s464] sm:$0x1]
    %v466 = vpack.c.bf16 %v461, %v461
    %v467 = vpack.c.bf16 %v465, %v465
    %s468 = scalar_lea.vmem [#allocation2], 48
    %v469 = vld [vmem:[%s468] sm:$0xf]
    %v470 = vld [vmem:[%s468 + $0x4] sm:$0xf]
    %v471 = vld [vmem:[%s468 + $0x8] sm:$0xf]
    %v472 = vld [vmem:[%s468 + $0xc] sm:$0xf]
    %s473 = scalar_lea.vmem %s3, 3
    %v474 = vld [vmem:[%s473] sm:$0x1]
    %v479 = vunpack.c.l.b16 %v469
    %v480 = vunpack.c.l.b16 %v470
    %v481 = vunpack.c.l.b16 %v471
    %v482 = vunpack.c.l.b16 %v472
    %v483 = vpack.c.b16 %v480, %v479
    %v484 = vpack.c.b16 %v482, %v481
    %v488 = vsel %vm101, %v466, 0
    %490 = vmatprep.subr.bf16.mxu0 0
    %491 = vmatpush1.bf16.msra.mxu0 0
    %492 = vmatprep.subr.bf16.mxu0 0
    %493 = vmatpush1.bf16.msra.mxu0 0
    %494 = vmatprep.subr.bf16.mxu0 0
    %495 = vmatpush1.bf16.msra.mxu0 0
    %496 = vmatprep.subr.bf16.mxu0 0
    %497 = vmatpush1.bf16.msra.mxu0 0
    %498 = vmatprep.subr.bf16.mxu0 0
    %499 = vmatpush1.bf16.msra.mxu0 0
    %500 = vmatprep.subr.bf16.mxu0 0
    %501 = vmatpush1.bf16.msra.mxu0 0
    %502 = vmatprep.subr.bf16.mxu0 0
    %503 = vmatpush1.bf16.msra.mxu0 %v484
    %504 = vmatprep.subr.bf16.mxu0 0
    %505 = vmatpush1.bf16.msra.mxu0 %v483
    %506 = vmatprep.subr.bf16.mxu0 0
    %507 = vmatpush2.bf16.msra.mxu0 0
    %508 = vmatprep.subr.bf16.mxu0 0
    %509 = vmatpush2.bf16.msra.mxu0 0
    %510 = vmatprep.subr.bf16.mxu0 0
    %511 = vmatpush2.bf16.msra.mxu0 0
    %512 = vmatprep.subr.bf16.mxu0 0
    %513 = vmatpush2.bf16.msra.mxu0 0
    %514 = vmatprep.subr.bf16.mxu0 0
    %515 = vmatpush2.bf16.msra.mxu0 0
    %516 = vmatprep.subr.bf16.mxu0 0
    %517 = vmatpush2.bf16.msra.mxu0 0
    %518 = vmatprep.subr.bf16.mxu0 0
    %519 = vmatpush2.bf16.msra.mxu0 0
    %520 = vmatprep.subr.bf16.mxu0 0
    %521 = vmatpush2.bf16.msra.mxu0 0
    %522 = vmatprep.mubr.bf16.mxu0 0
    %523 = vmatmul.mubr.bf16.gmra.mxu0 %v488
    %v524 = vpop.f32.mrf.mxu0
    %v525 = vadd.f32 %v474, %v524
    %v526 = vpop.f32.mrf.mxu0
    %v527 = vpop.f32.mrf.mxu0
    %v528 = vpop.f32.mrf.mxu0
    %529 = vdwg.mxu0
    %s530 = scalar_lea.vmem [#allocation2], 64
    %v531 = vld [vmem:[%s530] sm:$0xf]
    %v532 = vld [vmem:[%s530 + $0x4] sm:$0xf]
    %v533 = vld [vmem:[%s530 + $0x8] sm:$0xf]
    %v534 = vld [vmem:[%s530 + $0xc] sm:$0xf]
    %s535 = scalar_lea.vmem %s3, 4
    %v536 = vld [vmem:[%s535] sm:$0x1]
    %v541 = vunpack.c.l.b16 %v531
    %v542 = vunpack.c.l.b16 %v532
    %v543 = vunpack.c.l.b16 %v533
    %v544 = vunpack.c.l.b16 %v534
    %v545 = vpack.c.b16 %v542, %v541
    %v546 = vpack.c.b16 %v544, %v543
    %549 = vmatprep.subr.bf16.mxu0 0
    %550 = vmatpush1.bf16.msra.mxu0 0
    %551 = vmatprep.subr.bf16.mxu0 0
    %552 = vmatpush1.bf16.msra.mxu0 0
    %553 = vmatprep.subr.bf16.mxu0 0
    %554 = vmatpush1.bf16.msra.mxu0 0
    %555 = vmatprep.subr.bf16.mxu0 0
    %556 = vmatpush1.bf16.msra.mxu0 0
    %557 = vmatprep.subr.bf16.mxu0 0
    %558 = vmatpush1.bf16.msra.mxu0 0
    %559 = vmatprep.subr.bf16.mxu0 0
    %560 = vmatpush1.bf16.msra.mxu0 0
    %561 = vmatprep.subr.bf16.mxu0 0
    %562 = vmatpush1.bf16.msra.mxu0 %v546
    %563 = vmatprep.subr.bf16.mxu0 0
    %564 = vmatpush1.bf16.msra.mxu0 %v545
    %565 = vmatprep.subr.bf16.mxu0 0
    %566 = vmatpush2.bf16.msra.mxu0 0
    %567 = vmatprep.subr.bf16.mxu0 0
    %568 = vmatpush2.bf16.msra.mxu0 0
    %569 = vmatprep.subr.bf16.mxu0 0
    %570 = vmatpush2.bf16.msra.mxu0 0
    %571 = vmatprep.subr.bf16.mxu0 0
    %572 = vmatpush2.bf16.msra.mxu0 0
    %573 = vmatprep.subr.bf16.mxu0 0
    %574 = vmatpush2.bf16.msra.mxu0 0
    %575 = vmatprep.subr.bf16.mxu0 0
    %576 = vmatpush2.bf16.msra.mxu0 0
    %577 = vmatprep.subr.bf16.mxu0 0
    %578 = vmatpush2.bf16.msra.mxu0 0
    %579 = vmatprep.subr.bf16.mxu0 0
    %580 = vmatpush2.bf16.msra.mxu0 0
    %581 = vmatprep.mubr.bf16.mxu0 0
    %582 = vmatmul.mubr.bf16.gmra.mxu0 %v488
    %v583 = vpop.f32.mrf.mxu0
    %v584 = vadd.f32 %v536, %v583
    %v585 = vpop.f32.mrf.mxu0
    %v586 = vpop.f32.mrf.mxu0
    %v587 = vpop.f32.mrf.mxu0
    %588 = vdwg.mxu0
    %s589 = scalar_lea.vmem [#allocation2], 80
    %v590 = vld [vmem:[%s589] sm:$0xf]
    %v591 = vld [vmem:[%s589 + $0x4] sm:$0xf]
    %v592 = vld [vmem:[%s589 + $0x8] sm:$0xf]
    %v593 = vld [vmem:[%s589 + $0xc] sm:$0xf]
    %s594 = scalar_lea.vmem %s3, 5
    %v595 = vld [vmem:[%s594] sm:$0x1]
    %v600 = vunpack.c.l.b16 %v590
    %v601 = vunpack.c.l.b16 %v591
    %v602 = vunpack.c.l.b16 %v592
    %v603 = vunpack.c.l.b16 %v593
    %v604 = vpack.c.b16 %v601, %v600
    %v605 = vpack.c.b16 %v603, %v602
    %608 = vmatprep.subr.bf16.mxu0 0
    %609 = vmatpush1.bf16.msra.mxu0 0
    %610 = vmatprep.subr.bf16.mxu0 0
    %611 = vmatpush1.bf16.msra.mxu0 0
    %612 = vmatprep.subr.bf16.mxu0 0
    %613 = vmatpush1.bf16.msra.mxu0 0
    %614 = vmatprep.subr.bf16.mxu0 0
    %615 = vmatpush1.bf16.msra.mxu0 0
    %616 = vmatprep.subr.bf16.mxu0 0
    %617 = vmatpush1.bf16.msra.mxu0 0
    %618 = vmatprep.subr.bf16.mxu0 0
    %619 = vmatpush1.bf16.msra.mxu0 0
    %620 = vmatprep.subr.bf16.mxu0 0
    %621 = vmatpush1.bf16.msra.mxu0 %v605
    %622 = vmatprep.subr.bf16.mxu0 0
    %623 = vmatpush1.bf16.msra.mxu0 %v604
    %624 = vmatprep.subr.bf16.mxu0 0
    %625 = vmatpush2.bf16.msra.mxu0 0
    %626 = vmatprep.subr.bf16.mxu0 0
    %627 = vmatpush2.bf16.msra.mxu0 0
    %628 = vmatprep.subr.bf16.mxu0 0
    %629 = vmatpush2.bf16.msra.mxu0 0
    %630 = vmatprep.subr.bf16.mxu0 0
    %631 = vmatpush2.bf16.msra.mxu0 0
    %632 = vmatprep.subr.bf16.mxu0 0
    %633 = vmatpush2.bf16.msra.mxu0 0
    %634 = vmatprep.subr.bf16.mxu0 0
    %635 = vmatpush2.bf16.msra.mxu0 0
    %636 = vmatprep.subr.bf16.mxu0 0
    %637 = vmatpush2.bf16.msra.mxu0 0
    %638 = vmatprep.subr.bf16.mxu0 0
    %639 = vmatpush2.bf16.msra.mxu0 0
    %640 = vmatprep.mubr.bf16.mxu0 0
    %641 = vmatmul.mubr.bf16.gmra.mxu0 %v488
    %v642 = vpop.f32.mrf.mxu0
    %v643 = vadd.f32 %v595, %v642
    %v644 = vpop.f32.mrf.mxu0
    %v645 = vpop.f32.mrf.mxu0
    %v646 = vpop.f32.mrf.mxu0
    %647 = vdwg.mxu0
    %s648 = scalar_lea.vmem [#allocation5], 48
    %v649 = vld [vmem:[%s648] sm:$0xf]
    %v650 = vld [vmem:[%s648 + $0x4] sm:$0xf]
    %v651 = vld [vmem:[%s648 + $0x8] sm:$0xf]
    %v652 = vld [vmem:[%s648 + $0xc] sm:$0xf]
    %s653 = scalar_lea.vmem [#allocation7], 3
    %v654 = vld [vmem:[%s653] sm:$0x1]
    %v659 = vunpack.c.l.b16 %v649
    %v660 = vunpack.c.l.b16 %v650
    %v661 = vunpack.c.l.b16 %v651
    %v662 = vunpack.c.l.b16 %v652
    %v663 = vpack.c.b16 %v660, %v659
    %v664 = vpack.c.b16 %v662, %v661
    %v668 = vsel %vm101, %v467, 0
    %670 = vmatprep.subr.bf16.mxu0 0
    %671 = vmatpush1.bf16.msra.mxu0 0
    %672 = vmatprep.subr.bf16.mxu0 0
    %673 = vmatpush1.bf16.msra.mxu0 0
    %674 = vmatprep.subr.bf16.mxu0 0
    %675 = vmatpush1.bf16.msra.mxu0 0
    %676 = vmatprep.subr.bf16.mxu0 0
    %677 = vmatpush1.bf16.msra.mxu0 0
    %678 = vmatprep.subr.bf16.mxu0 0
    %679 = vmatpush1.bf16.msra.mxu0 0
    %680 = vmatprep.subr.bf16.mxu0 0
    %681 = vmatpush1.bf16.msra.mxu0 0
    %682 = vmatprep.subr.bf16.mxu0 0
    %683 = vmatpush1.bf16.msra.mxu0 %v664
    %684 = vmatprep.subr.bf16.mxu0 0
    %685 = vmatpush1.bf16.msra.mxu0 %v663
    %686 = vmatprep.subr.bf16.mxu0 0
    %687 = vmatpush2.bf16.msra.mxu0 0
    %688 = vmatprep.subr.bf16.mxu0 0
    %689 = vmatpush2.bf16.msra.mxu0 0
    %690 = vmatprep.subr.bf16.mxu0 0
    %691 = vmatpush2.bf16.msra.mxu0 0
    %692 = vmatprep.subr.bf16.mxu0 0
    %693 = vmatpush2.bf16.msra.mxu0 0
    %694 = vmatprep.subr.bf16.mxu0 0
    %695 = vmatpush2.bf16.msra.mxu0 0
    %696 = vmatprep.subr.bf16.mxu0 0
    %697 = vmatpush2.bf16.msra.mxu0 0
    %698 = vmatprep.subr.bf16.mxu0 0
    %699 = vmatpush2.bf16.msra.mxu0 0
    %700 = vmatprep.subr.bf16.mxu0 0
    %701 = vmatpush2.bf16.msra.mxu0 0
    %702 = vmatprep.mubr.bf16.mxu0 0
    %703 = vmatmul.mubr.bf16.gmra.mxu0 %v668
    %v704 = vpop.f32.mrf.mxu0
    %v705 = vadd.f32 %v654, %v704
    %v706 = vpop.f32.mrf.mxu0
    %v707 = vpop.f32.mrf.mxu0
    %v708 = vpop.f32.mrf.mxu0
    %709 = vdwg.mxu0
    %s710 = scalar_lea.vmem [#allocation5], 64
    %v711 = vld [vmem:[%s710] sm:$0xf]
    %v712 = vld [vmem:[%s710 + $0x4] sm:$0xf]
    %v713 = vld [vmem:[%s710 + $0x8] sm:$0xf]
    %v714 = vld [vmem:[%s710 + $0xc] sm:$0xf]
    %s715 = scalar_lea.vmem [#allocation7], 4
    %v716 = vld [vmem:[%s715] sm:$0x1]
    %v721 = vunpack.c.l.b16 %v711
    %v722 = vunpack.c.l.b16 %v712
    %v723 = vunpack.c.l.b16 %v713
    %v724 = vunpack.c.l.b16 %v714
    %v725 = vpack.c.b16 %v722, %v721
    %v726 = vpack.c.b16 %v724, %v723
    %729 = vmatprep.subr.bf16.mxu0 0
    %730 = vmatpush1.bf16.msra.mxu0 0
    %731 = vmatprep.subr.bf16.mxu0 0
    %732 = vmatpush1.bf16.msra.mxu0 0
    %733 = vmatprep.subr.bf16.mxu0 0
    %734 = vmatpush1.bf16.msra.mxu0 0
    %735 = vmatprep.subr.bf16.mxu0 0
    %736 = vmatpush1.bf16.msra.mxu0 0
    %737 = vmatprep.subr.bf16.mxu0 0
    %738 = vmatpush1.bf16.msra.mxu0 0
    %739 = vmatprep.subr.bf16.mxu0 0
    %740 = vmatpush1.bf16.msra.mxu0 0
    %741 = vmatprep.subr.bf16.mxu0 0
    %742 = vmatpush1.bf16.msra.mxu0 %v726
    %743 = vmatprep.subr.bf16.mxu0 0
    %744 = vmatpush1.bf16.msra.mxu0 %v725
    %745 = vmatprep.subr.bf16.mxu0 0
    %746 = vmatpush2.bf16.msra.mxu0 0
    %747 = vmatprep.subr.bf16.mxu0 0
    %748 = vmatpush2.bf16.msra.mxu0 0
    %749 = vmatprep.subr.bf16.mxu0 0
    %750 = vmatpush2.bf16.msra.mxu0 0
    %751 = vmatprep.subr.bf16.mxu0 0
    %752 = vmatpush2.bf16.msra.mxu0 0
    %753 = vmatprep.subr.bf16.mxu0 0
    %754 = vmatpush2.bf16.msra.mxu0 0
    %755 = vmatprep.subr.bf16.mxu0 0
    %756 = vmatpush2.bf16.msra.mxu0 0
    %757 = vmatprep.subr.bf16.mxu0 0
    %758 = vmatpush2.bf16.msra.mxu0 0
    %759 = vmatprep.subr.bf16.mxu0 0
    %760 = vmatpush2.bf16.msra.mxu0 0
    %761 = vmatprep.mubr.bf16.mxu0 0
    %762 = vmatmul.mubr.bf16.gmra.mxu0 %v668
    %v763 = vpop.f32.mrf.mxu0
    %v764 = vadd.f32 %v716, %v763
    %v765 = vpop.f32.mrf.mxu0
    %v766 = vpop.f32.mrf.mxu0
    %v767 = vpop.f32.mrf.mxu0
    %768 = vdwg.mxu0
    %s769 = scalar_lea.vmem [#allocation5], 80
    %v770 = vld [vmem:[%s769] sm:$0xf]
    %v771 = vld [vmem:[%s769 + $0x4] sm:$0xf]
    %v772 = vld [vmem:[%s769 + $0x8] sm:$0xf]
    %v773 = vld [vmem:[%s769 + $0xc] sm:$0xf]
    %s774 = scalar_lea.vmem [#allocation7], 5
    %v775 = vld [vmem:[%s774] sm:$0x1]
    %v780 = vunpack.c.l.b16 %v770
    %v781 = vunpack.c.l.b16 %v771
    %v782 = vunpack.c.l.b16 %v772
    %v783 = vunpack.c.l.b16 %v773
    %v784 = vpack.c.b16 %v781, %v780
    %v785 = vpack.c.b16 %v783, %v782
    %788 = vmatprep.subr.bf16.mxu0 0
    %789 = vmatpush1.bf16.msra.mxu0 0
    %790 = vmatprep.subr.bf16.mxu0 0
    %791 = vmatpush1.bf16.msra.mxu0 0
    %792 = vmatprep.subr.bf16.mxu0 0
    %793 = vmatpush1.bf16.msra.mxu0 0
    %794 = vmatprep.subr.bf16.mxu0 0
    %795 = vmatpush1.bf16.msra.mxu0 0
    %796 = vmatprep.subr.bf16.mxu0 0
    %797 = vmatpush1.bf16.msra.mxu0 0
    %798 = vmatprep.subr.bf16.mxu0 0
    %799 = vmatpush1.bf16.msra.mxu0 0
    %800 = vmatprep.subr.bf16.mxu0 0
    %801 = vmatpush1.bf16.msra.mxu0 %v785
    %802 = vmatprep.subr.bf16.mxu0 0
    %803 = vmatpush1.bf16.msra.mxu0 %v784
    %804 = vmatprep.subr.bf16.mxu0 0
    %805 = vmatpush2.bf16.msra.mxu0 0
    %806 = vmatprep.subr.bf16.mxu0 0
    %807 = vmatpush2.bf16.msra.mxu0 0
    %808 = vmatprep.subr.bf16.mxu0 0
    %809 = vmatpush2.bf16.msra.mxu0 0
    %810 = vmatprep.subr.bf16.mxu0 0
    %811 = vmatpush2.bf16.msra.mxu0 0
    %812 = vmatprep.subr.bf16.mxu0 0
    %813 = vmatpush2.bf16.msra.mxu0 0
    %814 = vmatprep.subr.bf16.mxu0 0
    %815 = vmatpush2.bf16.msra.mxu0 0
    %816 = vmatprep.subr.bf16.mxu0 0
    %817 = vmatpush2.bf16.msra.mxu0 0
    %818 = vmatprep.subr.bf16.mxu0 0
    %819 = vmatpush2.bf16.msra.mxu0 0
    %820 = vmatprep.mubr.bf16.mxu0 0
    %821 = vmatmul.mubr.bf16.gmra.mxu0 %v668
    %v822 = vpop.f32.mrf.mxu0
    %v823 = vadd.f32 %v775, %v822
    %v824 = vpop.f32.mrf.mxu0
    %v825 = vpop.f32.mrf.mxu0
    %v826 = vpop.f32.mrf.mxu0
    %827 = vdwg.mxu0
    %v828 = vadd.f32 %v525, %v705
    %v829 = vxor.u32 %v828, 2147483648
    %v830 = vmul.f32 %v829, 1.442695
    %v831 = vpow.pop %v830
    %v832 = vadd.f32 %v831, 1.0
    %v833 = vrcp.pop %v832
    %v834 = vmul.f32 1.0, %v833
    %v835 = vadd.f32 %v584, %v764
    %v836 = vxor.u32 %v835, 2147483648
    %v837 = vmul.f32 %v836, 1.442695
    %v838 = vpow.pop %v837
    %v839 = vadd.f32 %v838, 1.0
    %v840 = vrcp.pop %v839
    %v841 = vmul.f32 1.0, %v840
    %v842 = vmul.f32 %v834, %v823
    %v843 = vadd.f32 %v643, %v842
    %v844 = vtanh.pop %v843
    %v845 = vsub.f32 1.0, %v841
    %v846 = vmul.f32 %v845, %v844
    %v847 = vmul.f32 %v841, %v465
    %v848 = vadd.f32 %v846, %v847
    %s849 = scalar_lea.vmem [#allocation10], 1
    %850 = vst.msk [vmem:[%s849] sm:$0x1] %vm462, %v848
    // Predicated region
    $region42: #{tpu_custom_call.1} parent=1 // pred_check
      _
    $region43: #{tpu_custom_call.1} parent=1 // pred_check_branch
      %852 = sbr.rel (0) target = $region45
    $region44: #{tpu_custom_call.1} parent=1 // pred_region
      %s854 = ssub.s32 32, 32
      %855 = vsyncadd [#allocation4], %s854
      %s856 = sshll.u32 [#allocation10], 4
      %s857 = int_to_ptr.vmem [resolvable:$true] %s856
      %862 = dma.vmem_to_hbm [thread:$0]  %s857, 32, %s6, [#allocation4], 16, 16, 1
    $region45: #{tpu_custom_call.1} parent=1 // pred_fallthru
      _
    // Predicated region
    $region46: #{tpu_custom_call.1} parent=1 // pred_check
      _
    $region47: #{tpu_custom_call.1} parent=1 // pred_check_branch
      %864 = sbr.rel (0) target = $region49
    $region48: #{tpu_custom_call.1} parent=1 // pred_region
      %865 = dma.done [#allocation4], 32
    $region49: #{tpu_custom_call.1} parent=1 // pred_fallthru
      _
    %866 = vsyncpa [#allocation3], 1
    %867 = vsyncpa [#allocation6], 1
    %868 = vsyncpa [#allocation9], 1
    %869 = vsyncpa [#allocation4], 1

</llo_original>
